<compile_context>
chip_gen: v7x
topology: tpu7x:2x2x1
jax: 0.10.0
libtpu: 0.0.40
codegen_flags: <defaults>
</compile_context>

<pallas_src>
import math

import jax
import jax.numpy as jnp
from jax.experimental import pallas as pl
from jax.experimental.pallas import tpu as pltpu

_TARGET_TILE_BYTES = 4 * 1024 * 1024   # per-buffer budget; 4 live buffers -> ~16 MiB
_VMEM_LIMIT_BYTES = 48 << 20           # < v7x 64 MiB physical, > v5e 16 MiB scoped default


def _copy_kernel(x_ref, o_ref):
    # Identity copy of the current tile; pure DMA-bound, VPU/MXU idle.
    # TODO(synk): fuse a real downstream consumer here — a bare flatten should
    # just be `jnp.reshape` with no kernel at all (zero HBM traffic).
    o_ref[...] = x_ref[...]


def _sublane_multiple(dtype):
    itemsize = jnp.dtype(dtype).itemsize
    return max(8, 32 // max(1, itemsize))   # 8 f32, 16 bf16, 32 int8/fp8


def _row_tile(rows, row_bytes, sub, target_bytes):
    """Row tile: multiple of `sub`, under the byte budget, grid >= 2 if possible."""
    if rows <= sub:
        return rows                          # full-extent block (always legal)
    bn = (target_bytes // max(1, row_bytes)) // sub * sub
    bn = max(sub, min(bn, (rows // sub) * sub))
    if bn * 2 > rows and rows >= 2 * sub:
        # Guarantee at least two grid steps so the pipeline / megacore split engage.
        bn = max(sub, ((rows // 2) // sub) * sub)
    return bn


def flatten_layer(x):
    """Pallas equivalent of FlattenLayer.forward: x.view(x.shape[0], -1)."""
    n = x.shape[0]
    d = math.prod(x.shape[1:]) if x.ndim > 1 else 1
    total = n * d
    dtype = x.dtype
    itemsize = jnp.dtype(dtype).itemsize
    sub = _sublane_multiple(dtype)

    # The actual flatten — metadata-only in XLA.
    x2d = jnp.reshape(x, (n, d))

    cost = pl.CostEstimate(flops=0, transcendentals=0,
                           bytes_accessed=2 * total * itemsize)

    # Preferred path: flat, contiguous repack as (rows, L), L a 128-multiple.
    lane = next((c for c in (1024, 512, 256, 128) if total % c == 0), None)

    if lane is not None:
        rows = total // lane
        bn = _row_tile(rows, lane * itemsize, sub, _TARGET_TILE_BYTES)
        grid = (pl.cdiv(rows, bn),)
        x_flat = jnp.reshape(x2d, (rows, lane))
        out_flat = pl.pallas_call(
            _copy_kernel,
            out_shape=jax.ShapeDtypeStruct((rows, lane), dtype),
            grid=grid,
            in_specs=[pl.BlockSpec((bn, lane), lambda i: (i, 0))],
            out_specs=pl.BlockSpec((bn, lane), lambda i: (i, 0)),
            input_output_aliases={0: 0},
            cost_estimate=cost,
            compiler_params=pltpu.CompilerParams(
                dimension_semantics=("parallel",),
                vmem_limit_bytes=_VMEM_LIMIT_BYTES,
            ),
        )(x_flat)
        return jnp.reshape(out_flat, (n, d))

    # Fallback (total not a multiple of 128): tile (n, d) directly with
    # bounded 128-multiple lane blocks and a cdiv grid (last blocks masked).
    bd = min(512, (d // 128) * 128) if d >= 128 else d
    bn = _row_tile(n, bd * itemsize, sub, _TARGET_TILE_BYTES)
    grid = (pl.cdiv(n, bn), pl.cdiv(d, bd))
    return pl.pallas_call(
        _copy_kernel,
        out_shape=jax.ShapeDtypeStruct((n, d), dtype),
        grid=grid,
        in_specs=[pl.BlockSpec((bn, bd), lambda i, j: (i, j))],
        out_specs=pl.BlockSpec((bn, bd), lambda i, j: (i, j)),
        input_output_aliases={0: 0},
        cost_estimate=cost,
        compiler_params=pltpu.CompilerParams(
            dimension_semantics=("parallel", "parallel"),
            vmem_limit_bytes=_VMEM_LIMIT_BYTES,
        ),
    )(x2d)


if __name__ == "__main__":
    key = jax.random.PRNGKey(0)
    # Small NCHW input consistent with a conv-style feature map.
    x = jax.random.normal(key, (2, 4, 16, 16), dtype=jnp.float32)

    # Reference semantics: x.view(N, -1).
    ref = jnp.reshape(x, (x.shape[0], -1))

    flatten = jax.jit(flatten_layer)
    out = flatten(x)
    out = jax.block_until_ready(out)

    assert out.shape == (2, 4 * 16 * 16), out.shape
    assert out.dtype == x.dtype
    assert bool(jnp.array_equal(out, ref))

    print("KERNEL_OK")
</pallas_src>

<mosaic_0001>
module attributes {stable_mosaic.version = 11 : i64} {
  func.func @_copy_kernel(%arg0: i32, %arg1: memref<2x1024xf32, #tpu.memory_space<vmem>>, %arg2: memref<2x1024xf32, #tpu.memory_space<vmem>>) attributes {dimension_semantics = [#tpu.dimension_semantics<parallel>], iteration_bounds = array<i64: 1>, scalar_prefetch = 0 : i64, scratch_operands = 0 : i64, tpu.core_type = #tpu.core_type<tc>, window_params = [{transform_indices = @transform_0, window_bounds = array<i64: 2, 1024>}, {transform_indices = @transform_1, window_bounds = array<i64: 2, 1024>}]} {
    %c0 = arith.constant 0 : index
    %c0_0 = arith.constant 0 : index
    %0 = vector.load %arg1[%c0, %c0_0] : memref<2x1024xf32, #tpu.memory_space<vmem>>, vector<2x1024xf32>
    %c0_1 = arith.constant 0 : index
    %c0_2 = arith.constant 0 : index
    %1 = vector.load %arg2[%c0_1, %c0_2] : memref<2x1024xf32, #tpu.memory_space<vmem>>, vector<2x1024xf32>
    tpu.vector_store %arg2[%c0_1, %c0_2], %0 {strides = array<i32>} : memref<2x1024xf32, #tpu.memory_space<vmem>>, vector<2x1024xf32>,
    return
  }
  func.func @transform_0(%arg0: i32) -> (i32, i32) {
    %c0_i32 = arith.constant 0 : i32
    %c0_i32_0 = arith.constant 0 : i32
    return %arg0, %c0_i32 : i32, i32
  }
  func.func @transform_1(%arg0: i32) -> (i32, i32) {
    %c0_i32 = arith.constant 0 : i32
    %c0_i32_0 = arith.constant 0 : i32
    return %arg0, %c0_i32 : i32, i32
  }
}

</mosaic_0001>

<llo_original>
// kernel: flatten_layer.1
$region0: #{flatten_layer.1}
  #allocation0 [shape = 'u32[]', space=smem, size = 0x4, offset = 0x4, fixed_abs, tag = 'smem constant byte address 0x4 - core index']
  #allocation1 [shape = 'u32[144,128]{1,0:T(1,128)}', space=vmem, size = 0x12000, scoped, tag = 'internal scratch']
  %s0 = inlined_call_operand.hbm [shape: f32[2,1024], index: 0, kind: input, shape index: {}, may-alias: {0,1}]
  %s1 = inlined_call_operand.hbm [shape: f32[2,1024], index: 1, kind: output, shape index: {}, may-alias: {0,1}]
  %s2 = sld [smem:[#allocation0]]
  $region18: #{flatten_layer.1} parent=0
    _
  %s4 = ssub.s32 1, %s2
  %s5 = scalar_select 0, %s4, %s2
  $region1: #{flatten_layer.1} parent=0
    #allocation2 [shape = 'u8[8192]{0}', space=vmem, size = 0x2000, scoped, tag = 'input window, operand 0, single buffered']
    #allocation3 [shape = 's32[1]{0}', space=sflag, size = 0x4, scoped, tag = 'scoped memory for flatten_layer.1']
    #allocation4 [shape = 's32[1]{0}', space=sflag, size = 0x4, scoped, tag = 'scoped memory for flatten_layer.1']
    #allocation5 [shape = 'u8[8192]{0}', space=vmem, size = 0x2000, scoped, tag = 'output window, operand 0, single buffered']
    %6 = vsyncpa [#allocation3], 0
    %7 = vsyncpa [#allocation4], 0
    // Predicated region
    $region2: #{flatten_layer.1} parent=1 // pred_check
      _
    $region3: #{flatten_layer.1} parent=1 // pred_check_branch
      %9 = sbr.rel (0) target = $region5
    $region4: #{flatten_layer.1} parent=1 // pred_region
      %s11 = ssub.s32 256, 256
      %12 = vsyncadd [#allocation3], %s11
      %s14 = sshll.u32 [#allocation2], 4
      %s15 = int_to_ptr.vmem [resolvable:$true] %s14
      %17 = dma.hbm_to_vmem [thread:$0]  %s0, 256, %s15, [#allocation3]
    $region5: #{flatten_layer.1} parent=1 // pred_fallthru
      _
    // Predicated region
    $region6: #{flatten_layer.1} parent=1 // pred_check
      _
    $region7: #{flatten_layer.1} parent=1 // pred_check_branch
      %19 = sbr.rel (0) target = $region9
    $region8: #{flatten_layer.1} parent=1 // pred_region
      %20 = dma.done [#allocation3], 256
    $region9: #{flatten_layer.1} parent=1 // pred_fallthru
      _
    %v21 = vld [vmem:[#allocation2] sm:$0xff]
    %v22 = vld [vmem:[#allocation2 + $0x8] sm:$0xff]
    %23 = vst [vmem:[#allocation5] sm:$0xff] %v21
    %24 = vst [vmem:[#allocation5 + $0x8] sm:$0xff] %v22
    // Predicated region
    $region10: #{flatten_layer.1} parent=1 // pred_check
      _
    $region11: #{flatten_layer.1} parent=1 // pred_check_branch
      %26 = sbr.rel (0) target = $region13
    $region12: #{flatten_layer.1} parent=1 // pred_region
      %s28 = ssub.s32 256, 256
      %29 = vsyncadd [#allocation4], %s28
      %s31 = sshll.u32 [#allocation5], 4
      %s32 = int_to_ptr.vmem [resolvable:$true] %s31
      %34 = dma.vmem_to_hbm [thread:$0]  %s32, 256, %s1, [#allocation4]
    $region13: #{flatten_layer.1} parent=1 // pred_fallthru
      _
    // Predicated region
    $region14: #{flatten_layer.1} parent=1 // pred_check
      _
    $region15: #{flatten_layer.1} parent=1 // pred_check_branch
      %36 = sbr.rel (0) target = $region17
    $region16: #{flatten_layer.1} parent=1 // pred_region
      %37 = dma.done [#allocation4], 256
    $region17: #{flatten_layer.1} parent=1 // pred_fallthru
      _
    %38 = vsyncpa [#allocation3], 1
    %39 = vsyncpa [#allocation4], 1

</llo_original>
